<compile_context>
chip_gen: v6e
topology: v6e:2x2x1
jax: 0.10.0
libtpu: 0.0.40
codegen_flags: <defaults>
</compile_context>

<pallas_src>
import functools

import jax
import jax.numpy as jnp
from jax import lax
from jax.experimental import pallas as pl
from jax.experimental.pallas import tpu as pltpu

_LANE = 128
_MIB = 1024 * 1024


def _round_up(a: int, b: int) -> int:
    return -(-a // b) * b


def _device_vmem_bytes() -> int:
    """Per-TensorCore VMEM capacity; conservative fallback if query fails."""
    try:
        return int(pltpu.get_tpu_info().vmem_capacity_bytes)
    except Exception:
        return 64 * _MIB  # v7x per-TC size: the most conservative assumption


def _pick_tk(H: int, max_tk: int = 512) -> int:
    tk = min(max_tk, H)
    tk = max(_LANE, (tk // _LANE) * _LANE)
    while tk > _LANE and H % tk != 0:
        tk -= _LANE
    return tk


# --------------------------------------------------------------------------
# Kernels
# --------------------------------------------------------------------------
def _lm_head_kernel(x_ref, w1_ref, b1_ref, g_ref, w2_ref, b2_ref, o_ref, *, eps):
    # x_ref : (tm, H)    activation tile (pipelined)
    # w1_ref: (H, H)     Linear1 weight, (in, out), resident in VMEM
    # b1_ref: (1, H)     Linear1 bias (f32)
    # g_ref : (1, H)     RMSNorm weight (f32)
    # w2_ref: (H, Np)    Linear2 weight, (in, out), lane-padded
    # b2_ref: (1, Np)    Linear2 bias, lane-padded (f32)
    # o_ref : (tm, Np)   lane-dense output block
    x = x_ref[...]

    # ---- Linear 1 on the MXU with f32 accumulation ----
    y = jnp.dot(x, w1_ref[...], preferred_element_type=jnp.float32)
    y = y + b1_ref[...]

    # ---- RMSNorm in f32, gamma folded in before the single downcast ----
    ms = jnp.mean(y * y, axis=-1, keepdims=True)
    normed = (y * lax.rsqrt(ms + eps) * g_ref[...]).astype(x.dtype)

    # ---- Linear 2 (lane-padded -> unmasked full-width stores) ----
    z = jnp.dot(normed, w2_ref[...], preferred_element_type=jnp.float32)
    o_ref[...] = (z + b2_ref[...]).astype(o_ref.dtype)


def _lm_head_kernel_ktiled(x_ref, w1_ref, b1_ref, g_ref, w2_ref, b2_ref, o_ref,
                           acc_ref, *, eps):
    # Streams W1 along K; acc_ref is an f32 (tm, H) accumulator scratch.
    k = pl.program_id(1)

    @pl.when(k == 0)
    def _():
        acc_ref[...] = jnp.zeros_like(acc_ref)

    acc_ref[...] += jnp.dot(x_ref[...], w1_ref[...],
                            preferred_element_type=jnp.float32)

    @pl.when(k == pl.num_programs(1) - 1)
    def _():
        y = acc_ref[...] + b1_ref[...]
        ms = jnp.mean(y * y, axis=-1, keepdims=True)
        normed = (y * lax.rsqrt(ms + eps) * g_ref[...]).astype(o_ref.dtype)
        z = jnp.dot(normed, w2_ref[...], preferred_element_type=jnp.float32)
        o_ref[...] = (z + b2_ref[...]).astype(o_ref.dtype)


# --------------------------------------------------------------------------
# Parameter prep (one-time, init-time)
# --------------------------------------------------------------------------
def prepare_lm_head_params(w1, b1, gamma, w2, b2, *, compute_dtype=None):
    """Transpose torch-layout (out, in) weights to (in, out), lane-pad the tiny
    second Linear, store small vectors pre-upcast to f32, and optionally cast
    the big weights to a compute dtype (e.g. bf16 for mixed precision)."""
    H = w1.shape[1]
    n_out = w2.shape[0]
    n_pad = _round_up(max(n_out, _LANE), _LANE)
    if compute_dtype is not None:
        w1 = w1.astype(compute_dtype)
        w2 = w2.astype(compute_dtype)
    w1_t = jnp.transpose(w1)                                         # (H, H)
    w2_t = jnp.pad(jnp.transpose(w2), ((0, 0), (0, n_pad - n_out)))  # (H, n_pad)
    b1_f = b1.astype(jnp.float32).reshape(1, H)
    g_f = gamma.astype(jnp.float32).reshape(1, H)
    b2_f = jnp.pad(b2.astype(jnp.float32), (0, n_pad - n_out)).reshape(1, n_pad)
    return (w1_t, b1_f, g_f, w2_t, b2_f, n_out)


# --------------------------------------------------------------------------
# pallas_call wrapper
# --------------------------------------------------------------------------
def _forward_2d(x2d, w1_t, b1_f, g_f, w2_t, b2_f, *, eps, tm, tk, k_tiled,
                single_buffer_weights, vmem_limit_bytes):
    M, H = x2d.shape
    n_pad = w2_t.shape[1]
    xb = jnp.dtype(x2d.dtype).itemsize
    wb = jnp.dtype(w1_t.dtype).itemsize

    def const_spec(shape, grid_rank):
        # Grid-invariant operand: index_map is constant; single-buffer it.
        if grid_rank == 1:
            idx = lambda i: (0,) * len(shape)
        else:
            idx = lambda i, k: (0,) * len(shape)
        if single_buffer_weights:
            return pl.BlockSpec(shape, idx, pipeline_mode=pl.Buffered(1))
        return pl.BlockSpec(shape, idx)

    n_row_steps = pl.cdiv(M, tm)
    w1_restream = 0 if not k_tiled else (n_row_steps - 1) * H * H * wb
    cost = pl.CostEstimate(
        flops=2 * M * H * H + 2 * M * H * n_pad + 6 * M * H,
        transcendentals=M,
        bytes_accessed=(x2d.size * xb + w1_t.size * wb + w2_t.size * wb
                        + M * n_pad * xb + w1_restream),
    )

    if not k_tiled:
        grid = (n_row_steps,)
        in_specs = [
            pl.BlockSpec((tm, H), lambda i: (i, 0)),       # x tile (pipelined)
            const_spec((H, H), 1),                          # W1^T (resident)
            const_spec((1, H), 1),                          # b1 (f32)
            const_spec((1, H), 1),                          # gamma (f32)
            const_spec((H, n_pad), 1),                      # W2^T (padded)
            const_spec((1, n_pad), 1),                      # b2 (padded, f32)
        ]
        out_specs = pl.BlockSpec((tm, n_pad), lambda i: (i, 0))
        scratch = []
        kernel = functools.partial(_lm_head_kernel, eps=eps)
        dims = ("parallel",)
    else:
        grid = (n_row_steps, H // tk)
        in_specs = [
            pl.BlockSpec((tm, tk), lambda i, k: (i, k)),    # x K-block
            pl.BlockSpec((tk, H), lambda i, k: (k, 0)),     # W1^T K-block (streamed)
            const_spec((1, H), 2),
            const_spec((1, H), 2),
            const_spec((H, n_pad), 2),
            const_spec((1, n_pad), 2),
        ]
        out_specs = pl.BlockSpec((tm, n_pad), lambda i, k: (i, 0))
        scratch = [pltpu.VMEM((tm, H), jnp.float32)]
        kernel = functools.partial(_lm_head_kernel_ktiled, eps=eps)
        dims = ("parallel", "arbitrary")

    return pl.pallas_call(
        kernel,
        out_shape=jax.ShapeDtypeStruct((M, n_pad), x2d.dtype),
        grid_spec=pltpu.PrefetchScalarGridSpec(
            num_scalar_prefetch=0,
            grid=grid,
            in_specs=in_specs,
            out_specs=out_specs,
            scratch_shapes=scratch,
        ),
        compiler_params=pltpu.CompilerParams(
            dimension_semantics=dims,
            vmem_limit_bytes=int(vmem_limit_bytes),
        ),
        cost_estimate=cost,
    )(x2d, w1_t, b1_f, g_f, w2_t, b2_f)


def custom_lm_head_apply(x, params, *, eps=1e-6, tm=None, tk=None,
                         force_k_tiled=False, vmem_limit_bytes=None):
    """x: [B, S, H]; params from prepare_lm_head_params; returns [B, S, n_out]."""
    w1_t, b1_f, g_f, w2_t, b2_f, n_out = params
    B, S, H = x.shape
    M = B * S
    n_pad = w2_t.shape[1]
    x2d = x.reshape(M, H)
    xb = jnp.dtype(x.dtype).itemsize
    wb = jnp.dtype(w1_t.dtype).itemsize

    # ---- Row-tile selection ----
    row_align = 16 if x.dtype == jnp.bfloat16 else 8
    if tm is None:
        # 256 amortizes the ~0.35us/step overhead and feeds the MXU full-width;
        # drop to 128 when f32 weights at large H make VMEM tight (v5e-friendly).
        tm = 128 if (wb >= 4 and H >= 4096) else 256
    tm = max(row_align, min(_round_up(tm, row_align), _round_up(M, row_align)))
    # Ensure >= 2 row steps so the "parallel" axis can shard across both v7x TCs.
    if pl.cdiv(M, tm) < 2 and M > row_align:
        tm = _round_up(pl.cdiv(M, 2), row_align)

    # ---- VMEM budgeting (per TensorCore: each core holds its own W1 copy) ----
    device_vmem = _device_vmem_bytes()
    budget = int(device_vmem * 0.9)
    resident_need = (H * H * wb + H * n_pad * wb           # single-buffered weights
                     + 2 * tm * H * xb                      # x double-buffer
                     + 2 * tm * n_pad * xb                  # out double-buffer
                     + 3 * tm * H * 4                       # f32 working set
                     + (2 * H + n_pad) * 4 * 2
                     + 8 * _MIB)                            # Mosaic internal scratch

    k_tiled = (force_k_tiled or resident_need > budget) and (H % _LANE == 0)
    if k_tiled:
        if tk is None:
            tk = _pick_tk(H)
        need = (2 * tm * tk * xb + 2 * tk * H * wb + H * n_pad * wb
                + tm * H * 4 + 2 * tm * n_pad * xb + 2 * tm * H * 4 + 8 * _MIB)
    else:
        tk = H
        need = resident_need

    if vmem_limit_bytes is None:
        vmem_limit_bytes = min(max(32 * _MIB, need), budget)

    kwargs = dict(eps=eps, tm=tm, tk=tk, k_tiled=k_tiled,
                  vmem_limit_bytes=vmem_limit_bytes)
    try:
        out = _forward_2d(x2d, w1_t, b1_f, g_f, w2_t, b2_f,
                          single_buffer_weights=True, **kwargs)
    except Exception:
        # Fallback for jax/Mosaic versions that reject Buffered(1) on the
        # grid-invariant weight specs: use default (double) buffering.
        out = _forward_2d(x2d, w1_t, b1_f, g_f, w2_t, b2_f,
                          single_buffer_weights=False, **kwargs)

    # Padded columns are exact zeros (zero weights + zero bias); drop them.
    return out[:, :n_out].reshape(B, S, n_out)


def custom_lm_head(x, w1, b1, gamma, w2, b2, *, eps=1e-6, **kwargs):
    """Convenience wrapper (prep + apply). In a training loop, call
    prepare_lm_head_params once and reuse the result."""
    params = prepare_lm_head_params(w1, b1, gamma, w2, b2)
    return custom_lm_head_apply(x, params, eps=eps, **kwargs)


def _reference(x, w1, b1, gamma, w2, b2, eps=1e-6):
    """Pure-JAX reference mirroring the PyTorch forward."""
    y = x @ w1.T + b1
    yf = y.astype(jnp.float32)
    normed = (yf * lax.rsqrt(jnp.mean(yf * yf, -1, keepdims=True) + eps)).astype(y.dtype)
    normed = normed * gamma
    return normed @ w2.T + b2


if __name__ == "__main__":
    # --- Test 1: small shapes, resident-W1 path ---
    B, S, H = 2, 8, 32
    key = jax.random.PRNGKey(0)
    kx, kw1, kb1, kw2, kb2 = jax.random.split(key, 5)

    x = jax.random.normal(kx, (B, S, H), dtype=jnp.float32)
    bound1 = 1.0 / (H ** 0.5)
    w1 = jax.random.uniform(kw1, (H, H), jnp.float32, -bound1, bound1)
    b1 = jax.random.uniform(kb1, (H,), jnp.float32, -bound1, bound1)
    gamma = jnp.ones((H,), jnp.float32)          # RMSNorm weight init = ones
    w2 = jax.random.uniform(kw2, (3, H), jnp.float32, -bound1, bound1)
    b2 = jax.random.uniform(kb2, (3,), jnp.float32, -bound1, bound1)

    params = prepare_lm_head_params(w1, b1, gamma, w2, b2)
    out = jax.block_until_ready(custom_lm_head_apply(x, params))
    ref = _reference(x, w1, b1, gamma, w2, b2)
    assert out.shape == (B, S, 3), out.shape
    assert jnp.allclose(out, ref, atol=1e-5, rtol=1e-5), "mismatch vs reference"

    # --- Test 2: exercise the K-tiled (large-H / v7x VMEM) fallback path ---
    H2 = 256
    k2 = jax.random.split(jax.random.PRNGKey(1), 5)
    x2 = jax.random.normal(k2[0], (B, S, H2), dtype=jnp.float32)
    bound2 = 1.0 / (H2 ** 0.5)
    w1_2 = jax.random.uniform(k2[1], (H2, H2), jnp.float32, -bound2, bound2)
    b1_2 = jax.random.uniform(k2[2], (H2,), jnp.float32, -bound2, bound2)
    g_2 = jnp.ones((H2,), jnp.float32)
    w2_2 = jax.random.uniform(k2[3], (3, H2), jnp.float32, -bound2, bound2)
    b2_2 = jax.random.uniform(k2[4], (3,), jnp.float32, -bound2, bound2)

    p2 = prepare_lm_head_params(w1_2, b1_2, g_2, w2_2, b2_2)
    out2 = jax.block_until_ready(
        custom_lm_head_apply(x2, p2, force_k_tiled=True, tk=128))
    ref2 = _reference(x2, w1_2, b1_2, g_2, w2_2, b2_2)
    assert out2.shape == (B, S, 3), out2.shape
    # K-tiled accumulation order differs slightly from the single-shot matmul.
    assert jnp.allclose(out2, ref2, atol=1e-3, rtol=1e-3), "K-tiled mismatch"

    print("KERNEL_OK")
</pallas_src>

<mosaic_0001>
module attributes {stable_mosaic.version = 11 : i64} {
  func.func @_lm_head_kernel(%arg0: i32, %arg1: memref<8x32xf32, #tpu.memory_space<vmem>>, %arg2: memref<32x32xf32, #tpu.memory_space<vmem>>, %arg3: memref<1x32xf32, #tpu.memory_space<vmem>>, %arg4: memref<1x32xf32, #tpu.memory_space<vmem>>, %arg5: memref<32x128xf32, #tpu.memory_space<vmem>>, %arg6: memref<1x128xf32, #tpu.memory_space<vmem>>, %arg7: memref<8x128xf32, #tpu.memory_space<vmem>>) attributes {dimension_semantics = [#tpu.dimension_semantics<parallel>], iteration_bounds = array<i64: 2>, scalar_prefetch = 0 : i64, scratch_operands = 0 : i64, tpu.core_type = #tpu.core_type<tc>, window_params = [{transform_indices = @transform_0, window_bounds = array<i64: 8, 32>}, {pipeline_mode = #tpu.pipeline_mode<synchronous>, transform_indices = @transform_1, window_bounds = array<i64: 32, 32>}, {pipeline_mode = #tpu.pipeline_mode<synchronous>, transform_indices = @transform_2, window_bounds = array<i64: 1, 32>}, {pipeline_mode = #tpu.pipeline_mode<synchronous>, transform_indices = @transform_3, window_bounds = array<i64: 1, 32>}, {pipeline_mode = #tpu.pipeline_mode<synchronous>, transform_indices = @transform_4, window_bounds = array<i64: 32, 128>}, {pipeline_mode = #tpu.pipeline_mode<synchronous>, transform_indices = @transform_5, window_bounds = array<i64: 1, 128>}, {transform_indices = @transform_6, window_bounds = array<i64: 8, 128>}]} {
    %c0 = arith.constant 0 : index
    %c0_0 = arith.constant 0 : index
    %0 = vector.load %arg1[%c0, %c0_0] : memref<8x32xf32, #tpu.memory_space<vmem>>, vector<8x32xf32>
    %c0_1 = arith.constant 0 : index
    %c0_2 = arith.constant 0 : index
    %1 = vector.load %arg2[%c0_1, %c0_2] : memref<32x32xf32, #tpu.memory_space<vmem>>, vector<32x32xf32>
    %cst = arith.constant dense<0.000000e+00> : vector<8x32xf32>
    %2 = tpu.matmul %0, %1, %cst {dimension_numbers = #tpu.dot_dimension_numbers<[1], [0], [0], [1], [0, 0, 1, 1], [], []>} : vector<8x32xf32>, vector<32x32xf32>, vector<8x32xf32> -> vector<8x32xf32>
    %c0_3 = arith.constant 0 : index
    %c0_4 = arith.constant 0 : index
    %3 = vector.load %arg3[%c0_3, %c0_4] : memref<1x32xf32, #tpu.memory_space<vmem>>, vector<1x32xf32>
    %4 = vector.broadcast %3 : vector<1x32xf32> to vector<8x32xf32>
    %5 = arith.addf %2, %4 : vector<8x32xf32>
    %6 = arith.mulf %5, %5 : vector<8x32xf32>
    %cst_5 = arith.constant dense<0.000000e+00> : vector<8xf32>
    %7 = vector.multi_reduction <add>, %6, %cst_5 [1] : vector<8x32xf32> to vector<8xf32>
    %8 = vector.shape_cast %7 : vector<8xf32> to vector<8x1xf32>
    %cst_6 = arith.constant 3.200000e+01 : f32
    %9 = vector.broadcast %cst_6 : f32 to vector<8x1xf32>
    %10 = arith.divf %8, %9 : vector<8x1xf32>
    %cst_7 = arith.constant 9.99999997E-7 : f32
    %11 = vector.broadcast %cst_7 : f32 to vector<8x1xf32>
    %12 = arith.addf %10, %11 : vector<8x1xf32>
    %13 = math.rsqrt %12 : vector<8x1xf32>
    %14 = vector.broadcast %13 : vector<8x1xf32> to vector<8x32xf32>
    %15 = arith.mulf %5, %14 : vector<8x32xf32>
    %c0_8 = arith.constant 0 : index
    %c0_9 = arith.constant 0 : index
    %16 = vector.load %arg4[%c0_8, %c0_9] : memref<1x32xf32, #tpu.memory_space<vmem>>, vector<1x32xf32>
    %17 = vector.broadcast %16 : vector<1x32xf32> to vector<8x32xf32>
    %18 = arith.mulf %15, %17 : vector<8x32xf32>
    %c0_10 = arith.constant 0 : index
    %c0_11 = arith.constant 0 : index
    %19 = vector.load %arg5[%c0_10, %c0_11] : memref<32x128xf32, #tpu.memory_space<vmem>>, vector<32x128xf32>
    %cst_12 = arith.constant dense<0.000000e+00> : vector<8x128xf32>
    %20 = tpu.matmul %18, %19, %cst_12 {dimension_numbers = #tpu.dot_dimension_numbers<[1], [0], [0], [1], [0, 0, 1, 1], [], []>} : vector<8x32xf32>, vector<32x128xf32>, vector<8x128xf32> -> vector<8x128xf32>
    %c0_13 = arith.constant 0 : index
    %c0_14 = arith.constant 0 : index
    %21 = vector.load %arg6[%c0_13, %c0_14] : memref<1x128xf32, #tpu.memory_space<vmem>>, vector<1x128xf32>
    %22 = vector.broadcast %21 : vector<1x128xf32> to vector<8x128xf32>
    %23 = arith.addf %20, %22 : vector<8x128xf32>
    %c0_15 = arith.constant 0 : index
    %c0_16 = arith.constant 0 : index
    %24 = vector.load %arg7[%c0_15, %c0_16] : memref<8x128xf32, #tpu.memory_space<vmem>>, vector<8x128xf32>
    tpu.vector_store %arg7[%c0_15, %c0_16], %23 {strides = array<i32>} : memref<8x128xf32, #tpu.memory_space<vmem>>, vector<8x128xf32>,
    return
  }
  func.func @transform_0(%arg0: i32) -> (i32, i32) {
    %c0_i32 = arith.constant 0 : i32
    %c0_i32_0 = arith.constant 0 : i32
    return %arg0, %c0_i32 : i32, i32
  }
  func.func @transform_1(%arg0: i32) -> (i32, i32) {
    %c0_i32 = arith.constant 0 : i32
    %c0_i32_0 = arith.constant 0 : i32
    %c0_i32_1 = arith.constant 0 : i32
    return %c0_i32, %c0_i32_0 : i32, i32
  }
  func.func @transform_2(%arg0: i32) -> (i32, i32) {
    %c0_i32 = arith.constant 0 : i32
    %c0_i32_0 = arith.constant 0 : i32
    %c0_i32_1 = arith.constant 0 : i32
    return %c0_i32, %c0_i32_0 : i32, i32
  }
  func.func @transform_3(%arg0: i32) -> (i32, i32) {
    %c0_i32 = arith.constant 0 : i32
    %c0_i32_0 = arith.constant 0 : i32
    %c0_i32_1 = arith.constant 0 : i32
    return %c0_i32, %c0_i32_0 : i32, i32
  }
  func.func @transform_4(%arg0: i32) -> (i32, i32) {
    %c0_i32 = arith.constant 0 : i32
    %c0_i32_0 = arith.constant 0 : i32
    %c0_i32_1 = arith.constant 0 : i32
    return %c0_i32, %c0_i32_0 : i32, i32
  }
  func.func @transform_5(%arg0: i32) -> (i32, i32) {
    %c0_i32 = arith.constant 0 : i32
    %c0_i32_0 = arith.constant 0 : i32
    %c0_i32_1 = arith.constant 0 : i32
    return %c0_i32, %c0_i32_0 : i32, i32
  }
  func.func @transform_6(%arg0: i32) -> (i32, i32) {
    %c0_i32 = arith.constant 0 : i32
    %c0_i32_0 = arith.constant 0 : i32
    return %arg0, %c0_i32 : i32, i32
  }
}

module attributes {stable_mosaic.version = 11 : i64} {
  func.func @_lm_head_kernel(%arg0: i32, %arg1: memref<8x32xf32, #tpu.memory_space<vmem>>, %arg2: memref<32x32xf32, #tpu.memory_space<vmem>>, %arg3: memref<1x32xf32, #tpu.memory_space<vmem>>, %arg4: memref<1x32xf32, #tpu.memory_space<vmem>>, %arg5: memref<32x128xf32, #tpu.memory_space<vmem>>, %arg6: memref<1x128xf32, #tpu.memory_space<vmem>>, %arg7: memref<8x128xf32, #tpu.memory_space<vmem>>) attributes {dimension_semantics = [#tpu.dimension_semantics<parallel>], iteration_bounds = array<i64: 2>, scalar_prefetch = 0 : i64, scratch_operands = 0 : i64, tpu.core_type = #tpu.core_type<tc>, window_params = [{transform_indices = @transform_0, window_bounds = array<i64: 8, 32>}, {pipeline_mode = #tpu.pipeline_mode<synchronous>, transform_indices = @transform_1, window_bounds = array<i64: 32, 32>}, {pipeline_mode = #tpu.pipeline_mode<synchronous>, transform_indices = @transform_2, window_bounds = array<i64: 1, 32>}, {pipeline_mode = #tpu.pipeline_mode<synchronous>, transform_indices = @transform_3, window_bounds = array<i64: 1, 32>}, {pipeline_mode = #tpu.pipeline_mode<synchronous>, transform_indices = @transform_4, window_bounds = array<i64: 32, 128>}, {pipeline_mode = #tpu.pipeline_mode<synchronous>, transform_indices = @transform_5, window_bounds = array<i64: 1, 128>}, {transform_indices = @transform_6, window_bounds = array<i64: 8, 128>}]} {
    %c0 = arith.constant 0 : index
    %c0_0 = arith.constant 0 : index
    %0 = vector.load %arg1[%c0, %c0_0] : memref<8x32xf32, #tpu.memory_space<vmem>>, vector<8x32xf32>
    %c0_1 = arith.constant 0 : index
    %c0_2 = arith.constant 0 : index
    %1 = vector.load %arg2[%c0_1, %c0_2] : memref<32x32xf32, #tpu.memory_space<vmem>>, vector<32x32xf32>
    %cst = arith.constant dense<0.000000e+00> : vector<8x32xf32>
    %2 = tpu.matmul %0, %1, %cst {dimension_numbers = #tpu.dot_dimension_numbers<[1], [0], [0], [1], [0, 0, 1, 1], [], []>} : vector<8x32xf32>, vector<32x32xf32>, vector<8x32xf32> -> vector<8x32xf32>
    %c0_3 = arith.constant 0 : index
    %c0_4 = arith.constant 0 : index
    %3 = vector.load %arg3[%c0_3, %c0_4] : memref<1x32xf32, #tpu.memory_space<vmem>>, vector<1x32xf32>
    %4 = vector.broadcast %3 : vector<1x32xf32> to vector<8x32xf32>
    %5 = arith.addf %2, %4 : vector<8x32xf32>
    %6 = arith.mulf %5, %5 : vector<8x32xf32>
    %cst_5 = arith.constant dense<0.000000e+00> : vector<8xf32>
    %7 = vector.multi_reduction <add>, %6, %cst_5 [1] : vector<8x32xf32> to vector<8xf32>
    %8 = vector.shape_cast %7 : vector<8xf32> to vector<8x1xf32>
    %cst_6 = arith.constant 3.200000e+01 : f32
    %9 = vector.broadcast %cst_6 : f32 to vector<8x1xf32>
    %10 = arith.divf %8, %9 : vector<8x1xf32>
    %cst_7 = arith.constant 9.99999997E-7 : f32
    %11 = vector.broadcast %cst_7 : f32 to vector<8x1xf32>
    %12 = arith.addf %10, %11 : vector<8x1xf32>
    %13 = math.rsqrt %12 : vector<8x1xf32>
    %14 = vector.broadcast %13 : vector<8x1xf32> to vector<8x32xf32>
    %15 = arith.mulf %5, %14 : vector<8x32xf32>
    %c0_8 = arith.constant 0 : index
    %c0_9 = arith.constant 0 : index
    %16 = vector.load %arg4[%c0_8, %c0_9] : memref<1x32xf32, #tpu.memory_space<vmem>>, vector<1x32xf32>
    %17 = vector.broadcast %16 : vector<1x32xf32> to vector<8x32xf32>
    %18 = arith.mulf %15, %17 : vector<8x32xf32>
    %c0_10 = arith.constant 0 : index
    %c0_11 = arith.constant 0 : index
    %19 = vector.load %arg5[%c0_10, %c0_11] : memref<32x128xf32, #tpu.memory_space<vmem>>, vector<32x128xf32>
    %cst_12 = arith.constant dense<0.000000e+00> : vector<8x128xf32>
    %20 = tpu.matmul %18, %19, %cst_12 {dimension_numbers = #tpu.dot_dimension_numbers<[1], [0], [0], [1], [0, 0, 1, 1], [], []>} : vector<8x32xf32>, vector<32x128xf32>, vector<8x128xf32> -> vector<8x128xf32>
    %c0_13 = arith.constant 0 : index
    %c0_14 = arith.constant 0 : index
    %21 = vector.load %arg6[%c0_13, %c0_14] : memref<1x128xf32, #tpu.memory_space<vmem>>, vector<1x128xf32>
    %22 = vector.broadcast %21 : vector<1x128xf32> to vector<8x128xf32>
    %23 = arith.addf %20, %22 : vector<8x128xf32>
    %c0_15 = arith.constant 0 : index
    %c0_16 = arith.constant 0 : index
    %24 = vector.load %arg7[%c0_15, %c0_16] : memref<8x128xf32, #tpu.memory_space<vmem>>, vector<8x128xf32>
    tpu.vector_store %arg7[%c0_15, %c0_16], %23 {strides = array<i32>} : memref<8x128xf32, #tpu.memory_space<vmem>>, vector<8x128xf32>,
    return
  }
  func.func @transform_0(%arg0: i32) -> (i32, i32) {
    %c0_i32 = arith.constant 0 : i32
    %c0_i32_0 = arith.constant 0 : i32
    return %arg0, %c0_i32 : i32, i32
  }
  func.func @transform_1(%arg0: i32) -> (i32, i32) {
    %c0_i32 = arith.constant 0 : i32
    %c0_i32_0 = arith.constant 0 : i32
    %c0_i32_1 = arith.constant 0 : i32
    return %c0_i32, %c0_i32_0 : i32, i32
  }
  func.func @transform_2(%arg0: i32) -> (i32, i32) {
    %c0_i32 = arith.constant 0 : i32
    %c0_i32_0 = arith.constant 0 : i32
    %c0_i32_1 = arith.constant 0 : i32
    return %c0_i32, %c0_i32_0 : i32, i32
  }
  func.func @transform_3(%arg0: i32) -> (i32, i32) {
    %c0_i32 = arith.constant 0 : i32
    %c0_i32_0 = arith.constant 0 : i32
    %c0_i32_1 = arith.constant 0 : i32
    return %c0_i32, %c0_i32_0 : i32, i32
  }
  func.func @transform_4(%arg0: i32) -> (i32, i32) {
    %c0_i32 = arith.constant 0 : i32
    %c0_i32_0 = arith.constant 0 : i32
    %c0_i32_1 = arith.constant 0 : i32
    return %c0_i32, %c0_i32_0 : i32, i32
  }
  func.func @transform_5(%arg0: i32) -> (i32, i32) {
    %c0_i32 = arith.constant 0 : i32
    %c0_i32_0 = arith.constant 0 : i32
    %c0_i32_1 = arith.constant 0 : i32
    return %c0_i32, %c0_i32_0 : i32, i32
  }
  func.func @transform_6(%arg0: i32) -> (i32, i32) {
    %c0_i32 = arith.constant 0 : i32
    %c0_i32_0 = arith.constant 0 : i32
    return %arg0, %c0_i32 : i32, i32
  }
}

</mosaic_0001>

<llo_original>
// kernel: tpu_custom_call.1
$region0: #{tpu_custom_call.1}
  #allocation0 [shape = 'u32[]', space=smem, size = 0x4, offset = 0x4, fixed_abs, tag = 'smem constant byte address 0x4 - core index']
  #allocation1 [shape = 'u32[144,128]{1,0:T(1,128)}', space=vmem, size = 0x12000, scoped, tag = 'internal scratch']
  %s0 = inlined_call_operand.hbm [shape: f32[16,32], index: 0, kind: input, shape index: {}]
  %s1 = inlined_call_operand.hbm [shape: f32[32,32], index: 1, kind: input, shape index: {}]
  %s2 = inlined_call_operand.vmem [shape: f32[1,32], index: 2, kind: input, shape index: {}]
  %s3 = inlined_call_operand.vmem [shape: f32[1,32], index: 3, kind: input, shape index: {}]
  %s4 = inlined_call_operand.hbm [shape: f32[32,128], index: 4, kind: input, shape index: {}]
  %s5 = inlined_call_operand.vmem [shape: f32[1,128], index: 5, kind: input, shape index: {}]
  %s6 = inlined_call_operand.hbm [shape: f32[16,128], index: 6, kind: output, shape index: {}]
  %s7 = sld [smem:[#allocation0]]
  $region69: #{tpu_custom_call.1} parent=0
    _
  %s9 = ssub.s32 1, %s7
  %s10 = scalar_select 0, %s9, %s7
  $region1: #{tpu_custom_call.1} parent=0
    #allocation2 [shape = 'u8[8192]{0}', space=vmem, size = 0x2000, scoped, tag = 'input window, operand 0']
    #allocation3 [shape = 's32[2]{0}', space=sflag, size = 0x8, scoped, tag = 'scoped memory for tpu_custom_call.1']
    #allocation4 [shape = 's32[2]{0}', space=sflag, size = 0x8, scoped, tag = 'scoped memory for tpu_custom_call.1']
    #allocation5 [shape = 'u8[16384]{0}', space=vmem, size = 0x4000, scoped, tag = 'input window, operand 1, single buffered']
    #allocation6 [shape = 's32[1]{0}', space=sflag, size = 0x4, scoped, tag = 'scoped memory for tpu_custom_call.1']
    #allocation7 [shape = 'u8[16384]{0}', space=vmem, size = 0x4000, scoped, tag = 'input window, operand 4, single buffered']
    #allocation8 [shape = 'u8[8192]{0}', space=vmem, size = 0x2000, scoped, tag = 'output window, operand 0']
    %11 = vsyncpa [#allocation3], 0
    %s12 = scalar_lea.sflag [#allocation3], 1
    %13 = vsyncpa %s12, 0
    %14 = vsyncpa [#allocation6], 0
    %15 = vsyncpa [#allocation4], 0
    %s16 = scalar_lea.sflag [#allocation4], 1
    %17 = vsyncpa %s16, 0
    loop: start=0, step=1, limit=4
    $region2: #{tpu_custom_call.1} parent=1 // loop_pre_header
      _
    $region3: #{tpu_custom_call.1} parent=1 // loop_header
      %s19 = sphi 0, %s23
      %p20 = scmp.ge.s32.totalorder %s19, 4
      %s29 = sphi 0, %s31
      %s32 = sphi 0, %s29
      %s33 = sphi 0, %s32
      %s49 = sphi 0, %s33
      %s53 = sphi 0, %s53
      %s55 = sphi 0, %s53
      %s56 = sphi 0, %s55
      %s70 = sphi 0, %s56
      %s74 = sphi 0, %s74
      %s76 = sphi 0, %s74
      %s77 = sphi 0, %s76
      %s91 = sphi 0, %s77
      %s95 = sphi 0, %s95
      %s97 = sphi 0, %s95
      %s98 = sphi 0, %s97
      %s112 = sphi 0, %s98
      %s116 = sphi 0, %s116
      %s118 = sphi 0, %s116
      %s119 = sphi 0, %s118
      %s133 = sphi 0, %s119
      %s137 = sphi 0, %s137
      %s139 = sphi 0, %s137
      %s140 = sphi 0, %s139
      %s154 = sphi 0, %s140
      %s160 = sphi 0, %s162
      %s163 = sphi 0, %s160
      %s164 = sphi 0, %s163
      %s180 = sphi 0, %s164
    $region4: #{tpu_custom_call.1} parent=1 // loop_header_branch
      %22 = sbr.rel (%p20) target = $region8
    $region5: #{tpu_custom_call.1} parent=1 // loop_body
      %s24 = ssub.s32 %s19, 1
      %s25 = ssub.s32 %s19, 2
      %s26 = sadd.s32 %s19, 1
      %s27 = ssub.s32 %s19, %s26
      %p28 = scmp.eq.s32.totalorder %s27, 0
      %s30 = sadd.s32 %s29, 1
      %s31 = scalar_select %p28, %s29, %s30
      %p34 = pneg %p28
      %p35 = scmp.eq.s32.totalorder %s19, 1
      %p36 = por %p34, %p35
      %p37 = scmp.ne.s32.totalorder %s29, %s32
      %p38 = scmp.eq.s32.totalorder %s19, 0
      %p39 = por %p37, %p38
      %p40 = scmp.ne.s32.totalorder %s29, %s32
      %p41 = scmp.eq.s32.totalorder %s24, 1
      %p42 = por %p40, %p41
      %p43 = scmp.ne.s32.totalorder %s32, %s33
      %p44 = scmp.eq.s32.totalorder %s24, 0
      %p45 = por %p43, %p44
      %p46 = scmp.ne.s32.totalorder %s32, %s33
      %p47 = scmp.eq.s32.totalorder %s25, 1
      %p48 = por %p46, %p47
      %p50 = scmp.ne.s32.totalorder %s33, %s49
      %p51 = scmp.eq.s32.totalorder %s25, 0
      %p52 = por %p50, %p51
      %s54 = sadd.s32 %s53, 1
      %p57 = scmp.eq.s32.totalorder %s19, 1
      %p58 = scmp.ne.s32.totalorder %s53, %s55
      %p59 = scmp.eq.s32.totalorder %s19, 0
      %p60 = por %p58, %p59
      %p61 = scmp.ne.s32.totalorder %s53, %s55
      %p62 = scmp.eq.s32.totalorder %s24, 1
      %p63 = por %p61, %p62
      %p64 = scmp.ne.s32.totalorder %s55, %s56
      %p65 = scmp.eq.s32.totalorder %s24, 0
      %p66 = por %p64, %p65
      %p67 = scmp.ne.s32.totalorder %s55, %s56
      %p68 = scmp.eq.s32.totalorder %s25, 1
      %p69 = por %p67, %p68
      %p71 = scmp.ne.s32.totalorder %s56, %s70
      %p72 = scmp.eq.s32.totalorder %s25, 0
      %p73 = por %p71, %p72
      %s75 = sadd.s32 %s74, 1
      %p78 = scmp.eq.s32.totalorder %s19, 1
      %p79 = scmp.ne.s32.totalorder %s74, %s76
      %p80 = scmp.eq.s32.totalorder %s19, 0
      %p81 = por %p79, %p80
      %p82 = scmp.ne.s32.totalorder %s74, %s76
      %p83 = scmp.eq.s32.totalorder %s24, 1
      %p84 = por %p82, %p83
      %p85 = scmp.ne.s32.totalorder %s76, %s77
      %p86 = scmp.eq.s32.totalorder %s24, 0
      %p87 = por %p85, %p86
      %p88 = scmp.ne.s32.totalorder %s76, %s77
      %p89 = scmp.eq.s32.totalorder %s25, 1
      %p90 = por %p88, %p89
      %p92 = scmp.ne.s32.totalorder %s77, %s91
      %p93 = scmp.eq.s32.totalorder %s25, 0
      %p94 = por %p92, %p93
      %s96 = sadd.s32 %s95, 1
      %p99 = scmp.eq.s32.totalorder %s19, 1
      %p100 = scmp.ne.s32.totalorder %s95, %s97
      %p101 = scmp.eq.s32.totalorder %s19, 0
      %p102 = por %p100, %p101
      %p103 = scmp.ne.s32.totalorder %s95, %s97
      %p104 = scmp.eq.s32.totalorder %s24, 1
      %p105 = por %p103, %p104
      %p106 = scmp.ne.s32.totalorder %s97, %s98
      %p107 = scmp.eq.s32.totalorder %s24, 0
      %p108 = por %p106, %p107
      %p109 = scmp.ne.s32.totalorder %s97, %s98
      %p110 = scmp.eq.s32.totalorder %s25, 1
      %p111 = por %p109, %p110
      %p113 = scmp.ne.s32.totalorder %s98, %s112
      %p114 = scmp.eq.s32.totalorder %s25, 0
      %p115 = por %p113, %p114
      %s117 = sadd.s32 %s116, 1
      %p120 = scmp.eq.s32.totalorder %s19, 1
      %p121 = scmp.ne.s32.totalorder %s116, %s118
      %p122 = scmp.eq.s32.totalorder %s19, 0
      %p123 = por %p121, %p122
      %p124 = scmp.ne.s32.totalorder %s116, %s118
      %p125 = scmp.eq.s32.totalorder %s24, 1
      %p126 = por %p124, %p125
      %p127 = scmp.ne.s32.totalorder %s118, %s119
      %p128 = scmp.eq.s32.totalorder %s24, 0
      %p129 = por %p127, %p128
      %p130 = scmp.ne.s32.totalorder %s118, %s119
      %p131 = scmp.eq.s32.totalorder %s25, 1
      %p132 = por %p130, %p131
      %p134 = scmp.ne.s32.totalorder %s119, %s133
      %p135 = scmp.eq.s32.totalorder %s25, 0
      %p136 = por %p134, %p135
      %s138 = sadd.s32 %s137, 1
      %p141 = scmp.eq.s32.totalorder %s19, 1
      %p142 = scmp.ne.s32.totalorder %s137, %s139
      %p143 = scmp.eq.s32.totalorder %s19, 0
      %p144 = por %p142, %p143
      %p145 = scmp.ne.s32.totalorder %s137, %s139
      %p146 = scmp.eq.s32.totalorder %s24, 1
      %p147 = por %p145, %p146
      %p148 = scmp.ne.s32.totalorder %s139, %s140
      %p149 = scmp.eq.s32.totalorder %s24, 0
      %p150 = por %p148, %p149
      %p151 = scmp.ne.s32.totalorder %s139, %s140
      %p152 = scmp.eq.s32.totalorder %s25, 1
      %p153 = por %p151, %p152
      %p155 = scmp.ne.s32.totalorder %s140, %s154
      %p156 = scmp.eq.s32.totalorder %s25, 0
      %p157 = por %p155, %p156
      %s158 = ssub.s32 %s19, %s26
      %p159 = scmp.eq.s32.totalorder %s158, 0
      %s161 = sadd.s32 %s160, 1
      %s162 = scalar_select %p159, %s160, %s161
      %p165 = pneg %p159
      %p166 = scmp.eq.s32.totalorder %s19, 1
      %p167 = por %p165, %p166
      %p168 = scmp.ne.s32.totalorder %s160, %s163
      %p169 = scmp.eq.s32.totalorder %s19, 0
      %p170 = por %p168, %p169
      %p171 = scmp.ne.s32.totalorder %s160, %s163
      %p172 = scmp.eq.s32.totalorder %s24, 1
      %p173 = por %p171, %p172
      %p174 = scmp.ne.s32.totalorder %s163, %s164
      %p175 = scmp.eq.s32.totalorder %s24, 0
      %p176 = por %p174, %p175
      %p177 = scmp.ne.s32.totalorder %s163, %s164
      %p178 = scmp.eq.s32.totalorder %s25, 1
      %p179 = por %p177, %p178
      %p181 = scmp.ne.s32.totalorder %s164, %s180
      %p182 = scmp.eq.s32.totalorder %s25, 0
      %p183 = por %p181, %p182
      %p184 = scmp.le.s32.totalorder 1, %s19
      %p185 = scmp.lt.s32.totalorder %s19, 3
      %p186 = pnand %p184, %p185
      %p187 = pneg %p186
      // Predicated region
      $region9: #{tpu_custom_call.1} parent=5 // pred_check
        _
      $region10: #{tpu_custom_call.1} parent=5 // pred_check_branch
        %189 = sbr.rel (%p186) target = $region12
      $region11: #{tpu_custom_call.1} parent=5 // pred_region
        %s190 = ssub.s32 %s19, 1
        // Predicated region
        $region13: #{tpu_custom_call.1} parent=11 // pred_check
          %p191 = pneg %p66
        $region14: #{tpu_custom_call.1} parent=11 // pred_check_branch
          %193 = sbr.rel (%p191) target = $region16
        $region15: #{tpu_custom_call.1} parent=11 // pred_region
          %s195 = ssub.s32 512, 512
          %196 = vsyncadd [#allocation6], %s195
          %s197 = sshll.u32 [#allocation5], 4
          %s198 = int_to_ptr.vmem [resolvable:$true] %s197
          %203 = dma.hbm_to_vmem [thread:$0]  %s1, 512, %s198, [#allocation6], 128, 128, 8
        $region16: #{tpu_custom_call.1} parent=11 // pred_fallthru
          _
        // Predicated region
        $region17: #{tpu_custom_call.1} parent=11 // pred_check
          %p204 = pneg %p87
        $region18: #{tpu_custom_call.1} parent=11 // pred_check_branch
          %206 = sbr.rel (%p204) target = $region20
        $region19: #{tpu_custom_call.1} parent=11 // pred_region
          _
        $region20: #{tpu_custom_call.1} parent=11 // pred_fallthru
          _
        // Predicated region
        $region21: #{tpu_custom_call.1} parent=11 // pred_check
          %p207 = pneg %p108
        $region22: #{tpu_custom_call.1} parent=11 // pred_check_branch
          %209 = sbr.rel (%p207) target = $region24
        $region23: #{tpu_custom_call.1} parent=11 // pred_region
          _
        $region24: #{tpu_custom_call.1} parent=11 // pred_fallthru
          _
        // Predicated region
        $region25: #{tpu_custom_call.1} parent=11 // pred_check
          %p210 = pneg %p129
        $region26: #{tpu_custom_call.1} parent=11 // pred_check_branch
          %212 = sbr.rel (%p210) target = $region28
        $region27: #{tpu_custom_call.1} parent=11 // pred_region
          %s214 = ssub.s32 512, 512
          %215 = vsyncadd [#allocation6], %s214
          %s216 = sshll.u32 [#allocation7], 4
          %s217 = int_to_ptr.vmem [resolvable:$true] %s216
          %222 = dma.hbm_to_vmem [thread:$0]  %s4, 512, %s217, [#allocation6], 128, 128, 8
        $region28: #{tpu_custom_call.1} parent=11 // pred_fallthru
          _
        // Predicated region
        $region29: #{tpu_custom_call.1} parent=11 // pred_check
          %p223 = pneg %p150
        $region30: #{tpu_custom_call.1} parent=11 // pred_check_branch
          %225 = sbr.rel (%p223) target = $region32
        $region31: #{tpu_custom_call.1} parent=11 // pred_region
          _
        $region32: #{tpu_custom_call.1} parent=11 // pred_fallthru
          _
      $region12: #{tpu_custom_call.1} parent=5 // pred_fallthru
        _
      %p226 = scmp.lt.s32.totalorder %s19, 2
      // Predicated region
      $region33: #{tpu_custom_call.1} parent=5 // pred_check
        %p227 = pneg %p226
      $region34: #{tpu_custom_call.1} parent=5 // pred_check_branch
        %229 = sbr.rel (%p227) target = $region36
      $region35: #{tpu_custom_call.1} parent=5 // pred_region
        // Predicated region
        $region37: #{tpu_custom_call.1} parent=35 // pred_check
          %p230 = pneg %p39
        $region38: #{tpu_custom_call.1} parent=35 // pred_check_branch
          %232 = sbr.rel (%p230) target = $region40
        $region39: #{tpu_custom_call.1} parent=35 // pred_region
          %s233 = sand.u32 %s29, 1
          %s234 = scalar_lea.sflag [#allocation3], %s233
          %s235 = sand.u32 %s29, 1
          %s236 = smul.addr %s235, 8
          %s237 = scalar_lea.vmem [#allocation2], %s236
          %s239 = ssub.s32 128, 128
          %240 = vsyncadd %s234, %s239
          %s241 = smul.addr %s19, 128
          %s242 = scalar_lea.hbm %s0, %s241
          %s244 = sshll.u32 %s237, 4
          %s245 = int_to_ptr.vmem [resolvable:$true] %s244
          %247 = dma.hbm_to_vmem [thread:$0]  %s242, 128, %s245, %s234
        $region40: #{tpu_custom_call.1} parent=35 // pred_fallthru
          _
      $region36: #{tpu_custom_call.1} parent=5 // pred_fallthru
        _
      %p248 = scmp.le.s32.totalorder 1, %s19
      %p249 = scmp.lt.s32.totalorder %s19, 3
      %p250 = pnand %p248, %p249
      %p251 = pneg %p250
      // Predicated region
      $region41: #{tpu_custom_call.1} parent=5 // pred_check
        _
      $region42: #{tpu_custom_call.1} parent=5 // pred_check_branch
        %253 = sbr.rel (%p250) target = $region44
      $region43: #{tpu_custom_call.1} parent=5 // pred_region
        %s254 = ssub.s32 %s19, 1
        %s255 = sand.u32 %s32, 1
        %s256 = scalar_lea.sflag [#allocation3], %s255
        %s257 = sand.u32 %s32, 1
        %s258 = smul.addr %s257, 8
        %s259 = scalar_lea.vmem [#allocation2], %s258
        // Predicated region
        $region45: #{tpu_custom_call.1} parent=43 // pred_check
          %p260 = pneg %p45
        $region46: #{tpu_custom_call.1} parent=43 // pred_check_branch
          %262 = sbr.rel (%p260) target = $region48
        $region47: #{tpu_custom_call.1} parent=43 // pred_region
          %263 = dma.done %s256, 128
        $region48: #{tpu_custom_call.1} parent=43 // pred_fallthru
          _
        // Predicated region
        $region49: #{tpu_custom_call.1} parent=43 // pred_check
          %p264 = pneg %p66
        $region50: #{tpu_custom_call.1} parent=43 // pred_check_branch
          %266 = sbr.rel (%p264) target = $region52
        $region51: #{tpu_custom_call.1} parent=43 // pred_region
          %267 = dma.done [#allocation6], 512
        $region52: #{tpu_custom_call.1} parent=43 // pred_fallthru
          _
        // Predicated region
        $region53: #{tpu_custom_call.1} parent=43 // pred_check
          %p268 = pneg %p129
        $region54: #{tpu_custom_call.1} parent=43 // pred_check_branch
          %270 = sbr.rel (%p268) target = $region56
        $region55: #{tpu_custom_call.1} parent=43 // pred_region
          %271 = dma.done [#allocation6], 512
        $region56: #{tpu_custom_call.1} parent=43 // pred_fallthru
          _
        %s272 = sand.u32 %s32, 1
        %s273 = scalar_lea.sflag [#allocation3], %s272
        %s274 = sand.u32 %s32, 1
        %s275 = smul.addr %s274, 8
        %s276 = scalar_lea.vmem [#allocation2], %s275
        %p277 = pneg %p45
        %p278 = pneg %p42
        %p279 = pneg %p66
        %p280 = pneg %p63
        %p281 = pneg %p87
        %p282 = pneg %p84
        %p283 = pneg %p108
        %p284 = pneg %p105
        %p285 = pneg %p129
        %p286 = pneg %p126
        %p287 = pneg %p150
        %p288 = pneg %p147
        %p289 = pneg %p176
        %p290 = pneg %p173
        %s291 = sand.u32 %s163, 1
        %s292 = scalar_lea.sflag [#allocation4], %s291
        %s293 = sand.u32 %s163, 1
        %s294 = smul.addr %s293, 8
        %s295 = scalar_lea.vmem [#allocation8], %s294
        %v296 = vld [vmem:[%s259] sm:$0xff]
        %v297 = vld [vmem:[#allocation5] sm:$0xff]
        %v298 = vld [vmem:[#allocation5 + $0x8] sm:$0xff]
        %v299 = vld [vmem:[#allocation5 + $0x10] sm:$0xff]
        %v300 = vld [vmem:[#allocation5 + $0x18] sm:$0xff]
        %v301 = vld [vmem:[%s2] sm:$0x1]
        %v303 = vlaneseq
        %v304 = vshrl.u32 %v303, 7
        %v305 = vsub.s32 0, %v304
        %v306 = vrot.slane %v301, %v305
        %vm308 = vcmask 261120
        %v310 = vsel %vm308, %v296, 0
        %312 = vmatprep.subr.mxu0 0.0
        %313 = vmatpush1.msra.mxu0 0.0
        %314 = vmatprep.subr.mxu0 0.0
        %315 = vmatpush1.msra.mxu0 0.0
        %316 = vmatprep.subr.mxu0 0.0
        %317 = vmatpush1.msra.mxu0 0.0
        %318 = vmatprep.subr.mxu0 0.0
        %319 = vmatpush1.msra.mxu0 0.0
        %320 = vmatprep.subr.mxu0 0.0
        %321 = vmatpush1.msra.mxu0 0.0
        %322 = vmatprep.subr.mxu0 0.0
        %323 = vmatpush1.msra.mxu0 0.0
        %324 = vmatprep.subr.mxu0 0.0
        %325 = vmatpush1.msra.mxu0 0.0
        %326 = vmatprep.subr.mxu0 0.0
        %327 = vmatpush1.msra.mxu0 0.0
        %328 = vmatprep.subr.mxu0 0.0
        %329 = vmatpush1.msra.mxu0 0.0
        %330 = vmatprep.subr.mxu0 0.0
        %331 = vmatpush1.msra.mxu0 0.0
        %332 = vmatprep.subr.mxu0 0.0
        %333 = vmatpush1.msra.mxu0 0.0
        %334 = vmatprep.subr.mxu0 0.0
        %335 = vmatpush1.msra.mxu0 0.0
        %336 = vmatprep.subr.mxu0 0.0
        %337 = vmatpush1.msra.mxu0 %v300
        %338 = vmatprep.subr.mxu0 0.0
        %339 = vmatpush1.msra.mxu0 %v299
        %340 = vmatprep.subr.mxu0 0.0
        %341 = vmatpush1.msra.mxu0 %v298
        %342 = vmatprep.subr.mxu0 0.0
        %343 = vmatpush1.msra.mxu0 %v297
        %344 = vmatprep.subr.mxu0 0.0
        %345 = vmatpush2.msra.mxu0 0.0
        %346 = vmatprep.subr.mxu0 0.0
        %347 = vmatpush2.msra.mxu0 0.0
        %348 = vmatprep.subr.mxu0 0.0
        %349 = vmatpush2.msra.mxu0 0.0
        %350 = vmatprep.subr.mxu0 0.0
        %351 = vmatpush2.msra.mxu0 0.0
        %352 = vmatprep.subr.mxu0 0.0
        %353 = vmatpush2.msra.mxu0 0.0
        %354 = vmatprep.subr.mxu0 0.0
        %355 = vmatpush2.msra.mxu0 0.0
        %356 = vmatprep.subr.mxu0 0.0
        %357 = vmatpush2.msra.mxu0 0.0
        %358 = vmatprep.subr.mxu0 0.0
        %359 = vmatpush2.msra.mxu0 0.0
        %360 = vmatprep.subr.mxu0 0.0
        %361 = vmatpush2.msra.mxu0 0.0
        %362 = vmatprep.subr.mxu0 0.0
        %363 = vmatpush2.msra.mxu0 0.0
        %364 = vmatprep.subr.mxu0 0.0
        %365 = vmatpush2.msra.mxu0 0.0
        %366 = vmatprep.subr.mxu0 0.0
        %367 = vmatpush2.msra.mxu0 0.0
        %368 = vmatprep.subr.mxu0 0.0
        %369 = vmatpush2.msra.mxu0 0.0
        %370 = vmatprep.subr.mxu0 0.0
        %371 = vmatpush2.msra.mxu0 0.0
        %372 = vmatprep.subr.mxu0 0.0
        %373 = vmatpush2.msra.mxu0 0.0
        %374 = vmatprep.subr.mxu0 0.0
        %375 = vmatpush2.msra.mxu0 0.0
        %376 = vmatprep.mubr.f32.mxu0 0.0
        %377 = vmatmul.mubr.f32.gmra.mxu0 %v310
        %v378 = vpop.f32.mrf.mxu0
        %v379 = vadd.f32 %v306, %v378
        %v380 = vpop.f32.mrf.mxu0
        %381 = vdwg.mxu0
        %v382 = vmul.f32 %v379, %v379
        %v383 = vsel %vm308, %v382, 0.0
        %384 = vadd.xlane.f32.xlu0 %v383
        %v385 = vpop.xlane.xlu0 %384
        %v386 = vrcp.pop 32.0
        %v387 = vmul.f32 %v385, %v386
        %v388 = vadd.f32 %v387, 1e-06
        %v389 = vrsqrt.pop %v388
        %v390 = vmul.f32 %v379, %v389
        %v391 = vld [vmem:[%s3] sm:$0x1]
        %v393 = vlaneseq
        %v394 = vshrl.u32 %v393, 7
        %v395 = vsub.s32 0, %v394
        %v396 = vrot.slane %v391, %v395
        %v398 = vmul.f32 %v390, %v396
        %v399 = vld [vmem:[#allocation7] sm:$0xff]
        %v400 = vld [vmem:[#allocation7 + $0x8] sm:$0xff]
        %v401 = vld [vmem:[#allocation7 + $0x10] sm:$0xff]
        %v402 = vld [vmem:[#allocation7 + $0x18] sm:$0xff]
        %v403 = vld [vmem:[%s5] sm:$0x1]
        %v405 = vlaneseq
        %v406 = vshrl.u32 %v405, 7
        %v407 = vsub.s32 0, %v406
        %v408 = vrot.slane %v403, %v407
        %v411 = vsel %vm308, %v398, 0
        %413 = vmatprep.subr.mxu0 0.0
        %414 = vmatpush1.msra.mxu0 0.0
        %415 = vmatprep.subr.mxu0 0.0
        %416 = vmatpush1.msra.mxu0 0.0
        %417 = vmatprep.subr.mxu0 0.0
        %418 = vmatpush1.msra.mxu0 0.0
        %419 = vmatprep.subr.mxu0 0.0
        %420 = vmatpush1.msra.mxu0 0.0
        %421 = vmatprep.subr.mxu0 0.0
        %422 = vmatpush1.msra.mxu0 0.0
        %423 = vmatprep.subr.mxu0 0.0
        %424 = vmatpush1.msra.mxu0 0.0
        %425 = vmatprep.subr.mxu0 0.0
        %426 = vmatpush1.msra.mxu0 0.0
        %427 = vmatprep.subr.mxu0 0.0
        %428 = vmatpush1.msra.mxu0 0.0
        %429 = vmatprep.subr.mxu0 0.0
        %430 = vmatpush1.msra.mxu0 0.0
        %431 = vmatprep.subr.mxu0 0.0
        %432 = vmatpush1.msra.mxu0 0.0
        %433 = vmatprep.subr.mxu0 0.0
        %434 = vmatpush1.msra.mxu0 0.0
        %435 = vmatprep.subr.mxu0 0.0
        %436 = vmatpush1.msra.mxu0 0.0
        %437 = vmatprep.subr.mxu0 0.0
        %438 = vmatpush1.msra.mxu0 %v402
        %439 = vmatprep.subr.mxu0 0.0
        %440 = vmatpush1.msra.mxu0 %v401
        %441 = vmatprep.subr.mxu0 0.0
        %442 = vmatpush1.msra.mxu0 %v400
        %443 = vmatprep.subr.mxu0 0.0
        %444 = vmatpush1.msra.mxu0 %v399
        %445 = vmatprep.subr.mxu0 0.0
        %446 = vmatpush2.msra.mxu0 0.0
        %447 = vmatprep.subr.mxu0 0.0
        %448 = vmatpush2.msra.mxu0 0.0
        %449 = vmatprep.subr.mxu0 0.0
        %450 = vmatpush2.msra.mxu0 0.0
        %451 = vmatprep.subr.mxu0 0.0
        %452 = vmatpush2.msra.mxu0 0.0
        %453 = vmatprep.subr.mxu0 0.0
        %454 = vmatpush2.msra.mxu0 0.0
        %455 = vmatprep.subr.mxu0 0.0
        %456 = vmatpush2.msra.mxu0 0.0
        %457 = vmatprep.subr.mxu0 0.0
        %458 = vmatpush2.msra.mxu0 0.0
        %459 = vmatprep.subr.mxu0 0.0
        %460 = vmatpush2.msra.mxu0 0.0
        %461 = vmatprep.subr.mxu0 0.0
        %462 = vmatpush2.msra.mxu0 0.0
        %463 = vmatprep.subr.mxu0 0.0
        %464 = vmatpush2.msra.mxu0 0.0
        %465 = vmatprep.subr.mxu0 0.0
        %466 = vmatpush2.msra.mxu0 0.0
        %467 = vmatprep.subr.mxu0 0.0
        %468 = vmatpush2.msra.mxu0 0.0
        %469 = vmatprep.subr.mxu0 0.0
        %470 = vmatpush2.msra.mxu0 0.0
        %471 = vmatprep.subr.mxu0 0.0
        %472 = vmatpush2.msra.mxu0 0.0
        %473 = vmatprep.subr.mxu0 0.0
        %474 = vmatpush2.msra.mxu0 0.0
        %475 = vmatprep.subr.mxu0 0.0
        %476 = vmatpush2.msra.mxu0 0.0
        %477 = vmatprep.mubr.f32.mxu0 0.0
        %478 = vmatmul.mubr.f32.gmra.mxu0 %v411
        %v479 = vpop.f32.mrf.mxu0
        %v480 = vadd.f32 %v408, %v479
        %v481 = vpop.f32.mrf.mxu0
        %482 = vdwg.mxu0
        %483 = vst [vmem:[%s295] sm:$0xff] %v480
        %s484 = sand.u32 %s163, 1
        %s485 = scalar_lea.sflag [#allocation4], %s484
        %s486 = sand.u32 %s163, 1
        %s487 = smul.addr %s486, 8
        %s488 = scalar_lea.vmem [#allocation8], %s487
        // Predicated region
        $region57: #{tpu_custom_call.1} parent=43 // pred_check
          %p489 = pneg %p173
        $region58: #{tpu_custom_call.1} parent=43 // pred_check_branch
          %491 = sbr.rel (%p489) target = $region60
        $region59: #{tpu_custom_call.1} parent=43 // pred_region
          %s493 = ssub.s32 128, 128
          %494 = vsyncadd %s485, %s493
          %s495 = smul.addr %s24, 128
          %s496 = scalar_lea.hbm %s6, %s495
          %s498 = sshll.u32 %s488, 4
          %s499 = int_to_ptr.vmem [resolvable:$true] %s498
          %501 = dma.vmem_to_hbm [thread:$0]  %s499, 128, %s496, %s485
        $region60: #{tpu_custom_call.1} parent=43 // pred_fallthru
          _
      $region44: #{tpu_custom_call.1} parent=5 // pred_fallthru
        _
      %p502 = scmp.le.s32.totalorder 2, %s19
      // Predicated region
      $region61: #{tpu_custom_call.1} parent=5 // pred_check
        %p503 = pneg %p502
      $region62: #{tpu_custom_call.1} parent=5 // pred_check_branch
        %505 = sbr.rel (%p503) target = $region64
      $region63: #{tpu_custom_call.1} parent=5 // pred_region
        %s506 = ssub.s32 %s19, 2
        // Predicated region
        $region65: #{tpu_custom_call.1} parent=63 // pred_check
          %p507 = pneg %p179
        $region66: #{tpu_custom_call.1} parent=63 // pred_check_branch
          %509 = sbr.rel (%p507) target = $region68
        $region67: #{tpu_custom_call.1} parent=63 // pred_region
          %s510 = sand.u32 %s164, 1
          %s511 = scalar_lea.sflag [#allocation4], %s510
          %s512 = sand.u32 %s164, 1
          %s513 = smul.addr %s512, 8
          %s514 = scalar_lea.vmem [#allocation8], %s513
          %515 = dma.done %s511, 128
        $region68: #{tpu_custom_call.1} parent=63 // pred_fallthru
          _
      $region64: #{tpu_custom_call.1} parent=5 // pred_fallthru
        _
    $region6: #{tpu_custom_call.1} parent=1 // loop_footer
      %s23 = sadd.s32 1, %s19
    $region7: #{tpu_custom_call.1} parent=1 // loop_footer_branch
      %18 = sbr.rel target = $region3
    $region8: #{tpu_custom_call.1} parent=1 // loop_exit
      _
    %516 = vsyncpa [#allocation3], 1
    %s517 = scalar_lea.sflag [#allocation3], 1
    %518 = vsyncpa %s517, 1
    %519 = vsyncpa [#allocation6], 1
    %520 = vsyncpa [#allocation4], 1
    %s521 = scalar_lea.sflag [#allocation4], 1
    %522 = vsyncpa %s521, 1

// kernel: tpu_custom_call.1
$region0: #{tpu_custom_call.1}
  #allocation0 [shape = 'u32[]', space=smem, size = 0x4, offset = 0x4, fixed_abs, tag = 'smem constant byte address 0x4 - core index']
  #allocation1 [shape = 'u32[144,128]{1,0:T(1,128)}', space=vmem, size = 0x12000, scoped, tag = 'internal scratch']
  %s0 = inlined_call_operand.hbm [shape: f32[16,32], index: 0, kind: input, shape index: {}]
  %s1 = inlined_call_operand.hbm [shape: f32[32,32], index: 1, kind: input, shape index: {}]
  %s2 = inlined_call_operand.vmem [shape: f32[1,32], index: 2, kind: input, shape index: {}]
  %s3 = inlined_call_operand.vmem [shape: f32[1,32], index: 3, kind: input, shape index: {}]
  %s4 = inlined_call_operand.hbm [shape: f32[32,128], index: 4, kind: input, shape index: {}]
  %s5 = inlined_call_operand.vmem [shape: f32[1,128], index: 5, kind: input, shape index: {}]
  %s6 = inlined_call_operand.hbm [shape: f32[16,128], index: 6, kind: output, shape index: {}]
  %s7 = sld [smem:[#allocation0]]
  $region69: #{tpu_custom_call.1} parent=0
    _
  %s9 = ssub.s32 1, %s7
  %s10 = scalar_select 0, %s9, %s7
  $region1: #{tpu_custom_call.1} parent=0
    #allocation2 [shape = 'u8[8192]{0}', space=vmem, size = 0x2000, scoped, tag = 'input window, operand 0']
    #allocation3 [shape = 's32[2]{0}', space=sflag, size = 0x8, scoped, tag = 'scoped memory for tpu_custom_call.1']
    #allocation4 [shape = 's32[2]{0}', space=sflag, size = 0x8, scoped, tag = 'scoped memory for tpu_custom_call.1']
    #allocation5 [shape = 'u8[16384]{0}', space=vmem, size = 0x4000, scoped, tag = 'input window, operand 1, single buffered']
    #allocation6 [shape = 's32[1]{0}', space=sflag, size = 0x4, scoped, tag = 'scoped memory for tpu_custom_call.1']
    #allocation7 [shape = 'u8[16384]{0}', space=vmem, size = 0x4000, scoped, tag = 'input window, operand 4, single buffered']
    #allocation8 [shape = 'u8[8192]{0}', space=vmem, size = 0x2000, scoped, tag = 'output window, operand 0']
    %11 = vsyncpa [#allocation3], 0
    %s12 = scalar_lea.sflag [#allocation3], 1
    %13 = vsyncpa %s12, 0
    %14 = vsyncpa [#allocation6], 0
    %15 = vsyncpa [#allocation4], 0
    %s16 = scalar_lea.sflag [#allocation4], 1
    %17 = vsyncpa %s16, 0
    loop: start=0, step=1, limit=4
    $region2: #{tpu_custom_call.1} parent=1 // loop_pre_header
      _
    $region3: #{tpu_custom_call.1} parent=1 // loop_header
      %s19 = sphi 0, %s23
      %p20 = scmp.ge.s32.totalorder %s19, 4
      %s29 = sphi 0, %s31
      %s32 = sphi 0, %s29
      %s33 = sphi 0, %s32
      %s49 = sphi 0, %s33
      %s53 = sphi 0, %s53
      %s55 = sphi 0, %s53
      %s56 = sphi 0, %s55
      %s70 = sphi 0, %s56
      %s74 = sphi 0, %s74
      %s76 = sphi 0, %s74
      %s77 = sphi 0, %s76
      %s91 = sphi 0, %s77
      %s95 = sphi 0, %s95
      %s97 = sphi 0, %s95
      %s98 = sphi 0, %s97
      %s112 = sphi 0, %s98
      %s116 = sphi 0, %s116
      %s118 = sphi 0, %s116
      %s119 = sphi 0, %s118
      %s133 = sphi 0, %s119
      %s137 = sphi 0, %s137
      %s139 = sphi 0, %s137
      %s140 = sphi 0, %s139
      %s154 = sphi 0, %s140
      %s160 = sphi 0, %s162
      %s163 = sphi 0, %s160
      %s164 = sphi 0, %s163
      %s180 = sphi 0, %s164
    $region4: #{tpu_custom_call.1} parent=1 // loop_header_branch
      %22 = sbr.rel (%p20) target = $region8
    $region5: #{tpu_custom_call.1} parent=1 // loop_body
      %s24 = ssub.s32 %s19, 1
      %s25 = ssub.s32 %s19, 2
      %s26 = sadd.s32 %s19, 1
      %s27 = ssub.s32 %s19, %s26
      %p28 = scmp.eq.s32.totalorder %s27, 0
      %s30 = sadd.s32 %s29, 1
      %s31 = scalar_select %p28, %s29, %s30
      %p34 = pneg %p28
      %p35 = scmp.eq.s32.totalorder %s19, 1
      %p36 = por %p34, %p35
      %p37 = scmp.ne.s32.totalorder %s29, %s32
      %p38 = scmp.eq.s32.totalorder %s19, 0
      %p39 = por %p37, %p38
      %p40 = scmp.ne.s32.totalorder %s29, %s32
      %p41 = scmp.eq.s32.totalorder %s24, 1
      %p42 = por %p40, %p41
      %p43 = scmp.ne.s32.totalorder %s32, %s33
      %p44 = scmp.eq.s32.totalorder %s24, 0
      %p45 = por %p43, %p44
      %p46 = scmp.ne.s32.totalorder %s32, %s33
      %p47 = scmp.eq.s32.totalorder %s25, 1
      %p48 = por %p46, %p47
      %p50 = scmp.ne.s32.totalorder %s33, %s49
      %p51 = scmp.eq.s32.totalorder %s25, 0
      %p52 = por %p50, %p51
      %s54 = sadd.s32 %s53, 1
      %p57 = scmp.eq.s32.totalorder %s19, 1
      %p58 = scmp.ne.s32.totalorder %s53, %s55
      %p59 = scmp.eq.s32.totalorder %s19, 0
      %p60 = por %p58, %p59
      %p61 = scmp.ne.s32.totalorder %s53, %s55
      %p62 = scmp.eq.s32.totalorder %s24, 1
      %p63 = por %p61, %p62
      %p64 = scmp.ne.s32.totalorder %s55, %s56
      %p65 = scmp.eq.s32.totalorder %s24, 0
      %p66 = por %p64, %p65
      %p67 = scmp.ne.s32.totalorder %s55, %s56
      %p68 = scmp.eq.s32.totalorder %s25, 1
      %p69 = por %p67, %p68
      %p71 = scmp.ne.s32.totalorder %s56, %s70
      %p72 = scmp.eq.s32.totalorder %s25, 0
      %p73 = por %p71, %p72
      %s75 = sadd.s32 %s74, 1
      %p78 = scmp.eq.s32.totalorder %s19, 1
      %p79 = scmp.ne.s32.totalorder %s74, %s76
      %p80 = scmp.eq.s32.totalorder %s19, 0
      %p81 = por %p79, %p80
      %p82 = scmp.ne.s32.totalorder %s74, %s76
      %p83 = scmp.eq.s32.totalorder %s24, 1
      %p84 = por %p82, %p83
      %p85 = scmp.ne.s32.totalorder %s76, %s77
      %p86 = scmp.eq.s32.totalorder %s24, 0
      %p87 = por %p85, %p86
      %p88 = scmp.ne.s32.totalorder %s76, %s77
      %p89 = scmp.eq.s32.totalorder %s25, 1
      %p90 = por %p88, %p89
      %p92 = scmp.ne.s32.totalorder %s77, %s91
      %p93 = scmp.eq.s32.totalorder %s25, 0
      %p94 = por %p92, %p93
      %s96 = sadd.s32 %s95, 1
      %p99 = scmp.eq.s32.totalorder %s19, 1
      %p100 = scmp.ne.s32.totalorder %s95, %s97
      %p101 = scmp.eq.s32.totalorder %s19, 0
      %p102 = por %p100, %p101
      %p103 = scmp.ne.s32.totalorder %s95, %s97
      %p104 = scmp.eq.s32.totalorder %s24, 1
      %p105 = por %p103, %p104
      %p106 = scmp.ne.s32.totalorder %s97, %s98
      %p107 = scmp.eq.s32.totalorder %s24, 0
      %p108 = por %p106, %p107
      %p109 = scmp.ne.s32.totalorder %s97, %s98
      %p110 = scmp.eq.s32.totalorder %s25, 1
      %p111 = por %p109, %p110
      %p113 = scmp.ne.s32.totalorder %s98, %s112
      %p114 = scmp.eq.s32.totalorder %s25, 0
      %p115 = por %p113, %p114
      %s117 = sadd.s32 %s116, 1
      %p120 = scmp.eq.s32.totalorder %s19, 1
      %p121 = scmp.ne.s32.totalorder %s116, %s118
      %p122 = scmp.eq.s32.totalorder %s19, 0
      %p123 = por %p121, %p122
      %p124 = scmp.ne.s32.totalorder %s116, %s118
      %p125 = scmp.eq.s32.totalorder %s24, 1
      %p126 = por %p124, %p125
      %p127 = scmp.ne.s32.totalorder %s118, %s119
      %p128 = scmp.eq.s32.totalorder %s24, 0
      %p129 = por %p127, %p128
      %p130 = scmp.ne.s32.totalorder %s118, %s119
      %p131 = scmp.eq.s32.totalorder %s25, 1
      %p132 = por %p130, %p131
      %p134 = scmp.ne.s32.totalorder %s119, %s133
      %p135 = scmp.eq.s32.totalorder %s25, 0
      %p136 = por %p134, %p135
      %s138 = sadd.s32 %s137, 1
      %p141 = scmp.eq.s32.totalorder %s19, 1
      %p142 = scmp.ne.s32.totalorder %s137, %s139
      %p143 = scmp.eq.s32.totalorder %s19, 0
      %p144 = por %p142, %p143
      %p145 = scmp.ne.s32.totalorder %s137, %s139
      %p146 = scmp.eq.s32.totalorder %s24, 1
      %p147 = por %p145, %p146
      %p148 = scmp.ne.s32.totalorder %s139, %s140
      %p149 = scmp.eq.s32.totalorder %s24, 0
      %p150 = por %p148, %p149
      %p151 = scmp.ne.s32.totalorder %s139, %s140
      %p152 = scmp.eq.s32.totalorder %s25, 1
      %p153 = por %p151, %p152
      %p155 = scmp.ne.s32.totalorder %s140, %s154
      %p156 = scmp.eq.s32.totalorder %s25, 0
      %p157 = por %p155, %p156
      %s158 = ssub.s32 %s19, %s26
      %p159 = scmp.eq.s32.totalorder %s158, 0
      %s161 = sadd.s32 %s160, 1
      %s162 = scalar_select %p159, %s160, %s161
      %p165 = pneg %p159
      %p166 = scmp.eq.s32.totalorder %s19, 1
      %p167 = por %p165, %p166
      %p168 = scmp.ne.s32.totalorder %s160, %s163
      %p169 = scmp.eq.s32.totalorder %s19, 0
      %p170 = por %p168, %p169
      %p171 = scmp.ne.s32.totalorder %s160, %s163
      %p172 = scmp.eq.s32.totalorder %s24, 1
      %p173 = por %p171, %p172
      %p174 = scmp.ne.s32.totalorder %s163, %s164
      %p175 = scmp.eq.s32.totalorder %s24, 0
      %p176 = por %p174, %p175
      %p177 = scmp.ne.s32.totalorder %s163, %s164
      %p178 = scmp.eq.s32.totalorder %s25, 1
      %p179 = por %p177, %p178
      %p181 = scmp.ne.s32.totalorder %s164, %s180
      %p182 = scmp.eq.s32.totalorder %s25, 0
      %p183 = por %p181, %p182
      %p184 = scmp.le.s32.totalorder 1, %s19
      %p185 = scmp.lt.s32.totalorder %s19, 3
      %p186 = pnand %p184, %p185
      %p187 = pneg %p186
      // Predicated region
      $region9: #{tpu_custom_call.1} parent=5 // pred_check
        _
      $region10: #{tpu_custom_call.1} parent=5 // pred_check_branch
        %189 = sbr.rel (%p186) target = $region12
      $region11: #{tpu_custom_call.1} parent=5 // pred_region
        %s190 = ssub.s32 %s19, 1
        // Predicated region
        $region13: #{tpu_custom_call.1} parent=11 // pred_check
          %p191 = pneg %p66
        $region14: #{tpu_custom_call.1} parent=11 // pred_check_branch
          %193 = sbr.rel (%p191) target = $region16
        $region15: #{tpu_custom_call.1} parent=11 // pred_region
          %s195 = ssub.s32 512, 512
          %196 = vsyncadd [#allocation6], %s195
          %s197 = sshll.u32 [#allocation5], 4
          %s198 = int_to_ptr.vmem [resolvable:$true] %s197
          %203 = dma.hbm_to_vmem [thread:$0]  %s1, 512, %s198, [#allocation6], 128, 128, 8
        $region16: #{tpu_custom_call.1} parent=11 // pred_fallthru
          _
        // Predicated region
        $region17: #{tpu_custom_call.1} parent=11 // pred_check
          %p204 = pneg %p87
        $region18: #{tpu_custom_call.1} parent=11 // pred_check_branch
          %206 = sbr.rel (%p204) target = $region20
        $region19: #{tpu_custom_call.1} parent=11 // pred_region
          _
        $region20: #{tpu_custom_call.1} parent=11 // pred_fallthru
          _
        // Predicated region
        $region21: #{tpu_custom_call.1} parent=11 // pred_check
          %p207 = pneg %p108
        $region22: #{tpu_custom_call.1} parent=11 // pred_check_branch
          %209 = sbr.rel (%p207) target = $region24
        $region23: #{tpu_custom_call.1} parent=11 // pred_region
          _
        $region24: #{tpu_custom_call.1} parent=11 // pred_fallthru
          _
        // Predicated region
        $region25: #{tpu_custom_call.1} parent=11 // pred_check
          %p210 = pneg %p129
        $region26: #{tpu_custom_call.1} parent=11 // pred_check_branch
          %212 = sbr.rel (%p210) target = $region28
        $region27: #{tpu_custom_call.1} parent=11 // pred_region
          %s214 = ssub.s32 512, 512
          %215 = vsyncadd [#allocation6], %s214
          %s216 = sshll.u32 [#allocation7], 4
          %s217 = int_to_ptr.vmem [resolvable:$true] %s216
          %222 = dma.hbm_to_vmem [thread:$0]  %s4, 512, %s217, [#allocation6], 128, 128, 8
        $region28: #{tpu_custom_call.1} parent=11 // pred_fallthru
          _
        // Predicated region
        $region29: #{tpu_custom_call.1} parent=11 // pred_check
          %p223 = pneg %p150
        $region30: #{tpu_custom_call.1} parent=11 // pred_check_branch
          %225 = sbr.rel (%p223) target = $region32
        $region31: #{tpu_custom_call.1} parent=11 // pred_region
          _
        $region32: #{tpu_custom_call.1} parent=11 // pred_fallthru
          _
      $region12: #{tpu_custom_call.1} parent=5 // pred_fallthru
        _
      %p226 = scmp.lt.s32.totalorder %s19, 2
      // Predicated region
      $region33: #{tpu_custom_call.1} parent=5 // pred_check
        %p227 = pneg %p226
      $region34: #{tpu_custom_call.1} parent=5 // pred_check_branch
        %229 = sbr.rel (%p227) target = $region36
      $region35: #{tpu_custom_call.1} parent=5 // pred_region
        // Predicated region
        $region37: #{tpu_custom_call.1} parent=35 // pred_check
          %p230 = pneg %p39
        $region38: #{tpu_custom_call.1} parent=35 // pred_check_branch
          %232 = sbr.rel (%p230) target = $region40
        $region39: #{tpu_custom_call.1} parent=35 // pred_region
          %s233 = sand.u32 %s29, 1
          %s234 = scalar_lea.sflag [#allocation3], %s233
          %s235 = sand.u32 %s29, 1
          %s236 = smul.addr %s235, 8
          %s237 = scalar_lea.vmem [#allocation2], %s236
          %s239 = ssub.s32 128, 128
          %240 = vsyncadd %s234, %s239
          %s241 = smul.addr %s19, 128
          %s242 = scalar_lea.hbm %s0, %s241
          %s244 = sshll.u32 %s237, 4
          %s245 = int_to_ptr.vmem [resolvable:$true] %s244
          %247 = dma.hbm_to_vmem [thread:$0]  %s242, 128, %s245, %s234
        $region40: #{tpu_custom_call.1} parent=35 // pred_fallthru
          _
      $region36: #{tpu_custom_call.1} parent=5 // pred_fallthru
        _
      %p248 = scmp.le.s32.totalorder 1, %s19
      %p249 = scmp.lt.s32.totalorder %s19, 3
      %p250 = pnand %p248, %p249
      %p251 = pneg %p250
      // Predicated region
      $region41: #{tpu_custom_call.1} parent=5 // pred_check
        _
      $region42: #{tpu_custom_call.1} parent=5 // pred_check_branch
        %253 = sbr.rel (%p250) target = $region44
      $region43: #{tpu_custom_call.1} parent=5 // pred_region
        %s254 = ssub.s32 %s19, 1
        %s255 = sand.u32 %s32, 1
        %s256 = scalar_lea.sflag [#allocation3], %s255
        %s257 = sand.u32 %s32, 1
        %s258 = smul.addr %s257, 8
        %s259 = scalar_lea.vmem [#allocation2], %s258
        // Predicated region
        $region45: #{tpu_custom_call.1} parent=43 // pred_check
          %p260 = pneg %p45
        $region46: #{tpu_custom_call.1} parent=43 // pred_check_branch
          %262 = sbr.rel (%p260) target = $region48
        $region47: #{tpu_custom_call.1} parent=43 // pred_region
          %263 = dma.done %s256, 128
        $region48: #{tpu_custom_call.1} parent=43 // pred_fallthru
          _
        // Predicated region
        $region49: #{tpu_custom_call.1} parent=43 // pred_check
          %p264 = pneg %p66
        $region50: #{tpu_custom_call.1} parent=43 // pred_check_branch
          %266 = sbr.rel (%p264) target = $region52
        $region51: #{tpu_custom_call.1} parent=43 // pred_region
          %267 = dma.done [#allocation6], 512
        $region52: #{tpu_custom_call.1} parent=43 // pred_fallthru
          _
        // Predicated region
        $region53: #{tpu_custom_call.1} parent=43 // pred_check
          %p268 = pneg %p129
        $region54: #{tpu_custom_call.1} parent=43 // pred_check_branch
          %270 = sbr.rel (%p268) target = $region56
        $region55: #{tpu_custom_call.1} parent=43 // pred_region
          %271 = dma.done [#allocation6], 512
        $region56: #{tpu_custom_call.1} parent=43 // pred_fallthru
          _
        %s272 = sand.u32 %s32, 1
        %s273 = scalar_lea.sflag [#allocation3], %s272
        %s274 = sand.u32 %s32, 1
        %s275 = smul.addr %s274, 8
        %s276 = scalar_lea.vmem [#allocation2], %s275
        %p277 = pneg %p45
        %p278 = pneg %p42
        %p279 = pneg %p66
        %p280 = pneg %p63
        %p281 = pneg %p87
        %p282 = pneg %p84
        %p283 = pneg %p108
        %p284 = pneg %p105
        %p285 = pneg %p129
        %p286 = pneg %p126
        %p287 = pneg %p150
        %p288 = pneg %p147
        %p289 = pneg %p176
        %p290 = pneg %p173
        %s291 = sand.u32 %s163, 1
        %s292 = scalar_lea.sflag [#allocation4], %s291
        %s293 = sand.u32 %s163, 1
        %s294 = smul.addr %s293, 8
        %s295 = scalar_lea.vmem [#allocation8], %s294
        %v296 = vld [vmem:[%s259] sm:$0xff]
        %v297 = vld [vmem:[#allocation5] sm:$0xff]
        %v298 = vld [vmem:[#allocation5 + $0x8] sm:$0xff]
        %v299 = vld [vmem:[#allocation5 + $0x10] sm:$0xff]
        %v300 = vld [vmem:[#allocation5 + $0x18] sm:$0xff]
        %v301 = vld [vmem:[%s2] sm:$0x1]
        %v303 = vlaneseq
        %v304 = vshrl.u32 %v303, 7
        %v305 = vsub.s32 0, %v304
        %v306 = vrot.slane %v301, %v305
        %vm308 = vcmask 261120
        %v310 = vsel %vm308, %v296, 0
        %312 = vmatprep.subr.mxu0 0.0
        %313 = vmatpush1.msra.mxu0 0.0
        %314 = vmatprep.subr.mxu0 0.0
        %315 = vmatpush1.msra.mxu0 0.0
        %316 = vmatprep.subr.mxu0 0.0
        %317 = vmatpush1.msra.mxu0 0.0
        %318 = vmatprep.subr.mxu0 0.0
        %319 = vmatpush1.msra.mxu0 0.0
        %320 = vmatprep.subr.mxu0 0.0
        %321 = vmatpush1.msra.mxu0 0.0
        %322 = vmatprep.subr.mxu0 0.0
        %323 = vmatpush1.msra.mxu0 0.0
        %324 = vmatprep.subr.mxu0 0.0
        %325 = vmatpush1.msra.mxu0 0.0
        %326 = vmatprep.subr.mxu0 0.0
        %327 = vmatpush1.msra.mxu0 0.0
        %328 = vmatprep.subr.mxu0 0.0
        %329 = vmatpush1.msra.mxu0 0.0
        %330 = vmatprep.subr.mxu0 0.0
        %331 = vmatpush1.msra.mxu0 0.0
        %332 = vmatprep.subr.mxu0 0.0
        %333 = vmatpush1.msra.mxu0 0.0
        %334 = vmatprep.subr.mxu0 0.0
        %335 = vmatpush1.msra.mxu0 0.0
        %336 = vmatprep.subr.mxu0 0.0
        %337 = vmatpush1.msra.mxu0 %v300
        %338 = vmatprep.subr.mxu0 0.0
        %339 = vmatpush1.msra.mxu0 %v299
        %340 = vmatprep.subr.mxu0 0.0
        %341 = vmatpush1.msra.mxu0 %v298
        %342 = vmatprep.subr.mxu0 0.0
        %343 = vmatpush1.msra.mxu0 %v297
        %344 = vmatprep.subr.mxu0 0.0
        %345 = vmatpush2.msra.mxu0 0.0
        %346 = vmatprep.subr.mxu0 0.0
        %347 = vmatpush2.msra.mxu0 0.0
        %348 = vmatprep.subr.mxu0 0.0
        %349 = vmatpush2.msra.mxu0 0.0
        %350 = vmatprep.subr.mxu0 0.0
        %351 = vmatpush2.msra.mxu0 0.0
        %352 = vmatprep.subr.mxu0 0.0
        %353 = vmatpush2.msra.mxu0 0.0
        %354 = vmatprep.subr.mxu0 0.0
        %355 = vmatpush2.msra.mxu0 0.0
        %356 = vmatprep.subr.mxu0 0.0
        %357 = vmatpush2.msra.mxu0 0.0
        %358 = vmatprep.subr.mxu0 0.0
        %359 = vmatpush2.msra.mxu0 0.0
        %360 = vmatprep.subr.mxu0 0.0
        %361 = vmatpush2.msra.mxu0 0.0
        %362 = vmatprep.subr.mxu0 0.0
        %363 = vmatpush2.msra.mxu0 0.0
        %364 = vmatprep.subr.mxu0 0.0
        %365 = vmatpush2.msra.mxu0 0.0
        %366 = vmatprep.subr.mxu0 0.0
        %367 = vmatpush2.msra.mxu0 0.0
        %368 = vmatprep.subr.mxu0 0.0
        %369 = vmatpush2.msra.mxu0 0.0
        %370 = vmatprep.subr.mxu0 0.0
        %371 = vmatpush2.msra.mxu0 0.0
        %372 = vmatprep.subr.mxu0 0.0
        %373 = vmatpush2.msra.mxu0 0.0
        %374 = vmatprep.subr.mxu0 0.0
        %375 = vmatpush2.msra.mxu0 0.0
        %376 = vmatprep.mubr.f32.mxu0 0.0
        %377 = vmatmul.mubr.f32.gmra.mxu0 %v310
        %v378 = vpop.f32.mrf.mxu0
        %v379 = vadd.f32 %v306, %v378
        %v380 = vpop.f32.mrf.mxu0
        %381 = vdwg.mxu0
        %v382 = vmul.f32 %v379, %v379
        %v383 = vsel %vm308, %v382, 0.0
        %384 = vadd.xlane.f32.xlu0 %v383
        %v385 = vpop.xlane.xlu0 %384
        %v386 = vrcp.pop 32.0
        %v387 = vmul.f32 %v385, %v386
        %v388 = vadd.f32 %v387, 1e-06
        %v389 = vrsqrt.pop %v388
        %v390 = vmul.f32 %v379, %v389
        %v391 = vld [vmem:[%s3] sm:$0x1]
        %v393 = vlaneseq
        %v394 = vshrl.u32 %v393, 7
        %v395 = vsub.s32 0, %v394
        %v396 = vrot.slane %v391, %v395
        %v398 = vmul.f32 %v390, %v396
        %v399 = vld [vmem:[#allocation7] sm:$0xff]
        %v400 = vld [vmem:[#allocation7 + $0x8] sm:$0xff]
        %v401 = vld [vmem:[#allocation7 + $0x10] sm:$0xff]
        %v402 = vld [vmem:[#allocation7 + $0x18] sm:$0xff]
        %v403 = vld [vmem:[%s5] sm:$0x1]
        %v405 = vlaneseq
        %v406 = vshrl.u32 %v405, 7
        %v407 = vsub.s32 0, %v406
        %v408 = vrot.slane %v403, %v407
        %v411 = vsel %vm308, %v398, 0
        %413 = vmatprep.subr.mxu0 0.0
        %414 = vmatpush1.msra.mxu0 0.0
        %415 = vmatprep.subr.mxu0 0.0
        %416 = vmatpush1.msra.mxu0 0.0
        %417 = vmatprep.subr.mxu0 0.0
        %418 = vmatpush1.msra.mxu0 0.0
        %419 = vmatprep.subr.mxu0 0.0
        %420 = vmatpush1.msra.mxu0 0.0
        %421 = vmatprep.subr.mxu0 0.0
        %422 = vmatpush1.msra.mxu0 0.0
        %423 = vmatprep.subr.mxu0 0.0
        %424 = vmatpush1.msra.mxu0 0.0
        %425 = vmatprep.subr.mxu0 0.0
        %426 = vmatpush1.msra.mxu0 0.0
        %427 = vmatprep.subr.mxu0 0.0
        %428 = vmatpush1.msra.mxu0 0.0
        %429 = vmatprep.subr.mxu0 0.0
        %430 = vmatpush1.msra.mxu0 0.0
        %431 = vmatprep.subr.mxu0 0.0
        %432 = vmatpush1.msra.mxu0 0.0
        %433 = vmatprep.subr.mxu0 0.0
        %434 = vmatpush1.msra.mxu0 0.0
        %435 = vmatprep.subr.mxu0 0.0
        %436 = vmatpush1.msra.mxu0 0.0
        %437 = vmatprep.subr.mxu0 0.0
        %438 = vmatpush1.msra.mxu0 %v402
        %439 = vmatprep.subr.mxu0 0.0
        %440 = vmatpush1.msra.mxu0 %v401
        %441 = vmatprep.subr.mxu0 0.0
        %442 = vmatpush1.msra.mxu0 %v400
        %443 = vmatprep.subr.mxu0 0.0
        %444 = vmatpush1.msra.mxu0 %v399
        %445 = vmatprep.subr.mxu0 0.0
        %446 = vmatpush2.msra.mxu0 0.0
        %447 = vmatprep.subr.mxu0 0.0
        %448 = vmatpush2.msra.mxu0 0.0
        %449 = vmatprep.subr.mxu0 0.0
        %450 = vmatpush2.msra.mxu0 0.0
        %451 = vmatprep.subr.mxu0 0.0
        %452 = vmatpush2.msra.mxu0 0.0
        %453 = vmatprep.subr.mxu0 0.0
        %454 = vmatpush2.msra.mxu0 0.0
        %455 = vmatprep.subr.mxu0 0.0
        %456 = vmatpush2.msra.mxu0 0.0
        %457 = vmatprep.subr.mxu0 0.0
        %458 = vmatpush2.msra.mxu0 0.0
        %459 = vmatprep.subr.mxu0 0.0
        %460 = vmatpush2.msra.mxu0 0.0
        %461 = vmatprep.subr.mxu0 0.0
        %462 = vmatpush2.msra.mxu0 0.0
        %463 = vmatprep.subr.mxu0 0.0
        %464 = vmatpush2.msra.mxu0 0.0
        %465 = vmatprep.subr.mxu0 0.0
        %466 = vmatpush2.msra.mxu0 0.0
        %467 = vmatprep.subr.mxu0 0.0
        %468 = vmatpush2.msra.mxu0 0.0
        %469 = vmatprep.subr.mxu0 0.0
        %470 = vmatpush2.msra.mxu0 0.0
        %471 = vmatprep.subr.mxu0 0.0
        %472 = vmatpush2.msra.mxu0 0.0
        %473 = vmatprep.subr.mxu0 0.0
        %474 = vmatpush2.msra.mxu0 0.0
        %475 = vmatprep.subr.mxu0 0.0
        %476 = vmatpush2.msra.mxu0 0.0
        %477 = vmatprep.mubr.f32.mxu0 0.0
        %478 = vmatmul.mubr.f32.gmra.mxu0 %v411
        %v479 = vpop.f32.mrf.mxu0
        %v480 = vadd.f32 %v408, %v479
        %v481 = vpop.f32.mrf.mxu0
        %482 = vdwg.mxu0
        %483 = vst [vmem:[%s295] sm:$0xff] %v480
        %s484 = sand.u32 %s163, 1
        %s485 = scalar_lea.sflag [#allocation4], %s484
        %s486 = sand.u32 %s163, 1
        %s487 = smul.addr %s486, 8
        %s488 = scalar_lea.vmem [#allocation8], %s487
        // Predicated region
        $region57: #{tpu_custom_call.1} parent=43 // pred_check
          %p489 = pneg %p173
        $region58: #{tpu_custom_call.1} parent=43 // pred_check_branch
          %491 = sbr.rel (%p489) target = $region60
        $region59: #{tpu_custom_call.1} parent=43 // pred_region
          %s493 = ssub.s32 128, 128
          %494 = vsyncadd %s485, %s493
          %s495 = smul.addr %s24, 128
          %s496 = scalar_lea.hbm %s6, %s495
          %s498 = sshll.u32 %s488, 4
          %s499 = int_to_ptr.vmem [resolvable:$true] %s498
          %501 = dma.vmem_to_hbm [thread:$0]  %s499, 128, %s496, %s485
        $region60: #{tpu_custom_call.1} parent=43 // pred_fallthru
          _
      $region44: #{tpu_custom_call.1} parent=5 // pred_fallthru
        _
      %p502 = scmp.le.s32.totalorder 2, %s19
      // Predicated region
      $region61: #{tpu_custom_call.1} parent=5 // pred_check
        %p503 = pneg %p502
      $region62: #{tpu_custom_call.1} parent=5 // pred_check_branch
        %505 = sbr.rel (%p503) target = $region64
      $region63: #{tpu_custom_call.1} parent=5 // pred_region
        %s506 = ssub.s32 %s19, 2
        // Predicated region
        $region65: #{tpu_custom_call.1} parent=63 // pred_check
          %p507 = pneg %p179
        $region66: #{tpu_custom_call.1} parent=63 // pred_check_branch
          %509 = sbr.rel (%p507) target = $region68
        $region67: #{tpu_custom_call.1} parent=63 // pred_region
          %s510 = sand.u32 %s164, 1
          %s511 = scalar_lea.sflag [#allocation4], %s510
          %s512 = sand.u32 %s164, 1
          %s513 = smul.addr %s512, 8
          %s514 = scalar_lea.vmem [#allocation8], %s513
          %515 = dma.done %s511, 128
        $region68: #{tpu_custom_call.1} parent=63 // pred_fallthru
          _
      $region64: #{tpu_custom_call.1} parent=5 // pred_fallthru
        _
    $region6: #{tpu_custom_call.1} parent=1 // loop_footer
      %s23 = sadd.s32 1, %s19
    $region7: #{tpu_custom_call.1} parent=1 // loop_footer_branch
      %18 = sbr.rel target = $region3
    $region8: #{tpu_custom_call.1} parent=1 // loop_exit
      _
    %516 = vsyncpa [#allocation3], 1
    %s517 = scalar_lea.sflag [#allocation3], 1
    %518 = vsyncpa %s517, 1
    %519 = vsyncpa [#allocation6], 1
    %520 = vsyncpa [#allocation4], 1
    %s521 = scalar_lea.sflag [#allocation4], 1
    %522 = vsyncpa %s521, 1

</llo_original>
